<compile_context>
chip_gen: v6e
topology: v6e:2x2x1
jax: 0.10.0
libtpu: 0.0.40
codegen_flags: <defaults>
</compile_context>

<pallas_src>
import functools

import jax
import jax.numpy as jnp
from jax.experimental import pallas as pl
from jax.experimental.pallas import tpu as pltpu


# --------------------------------------------------------------------------
# Fused single-pass path: whole (N, 2, tf, HW) channel-tile block in VMEM.
# --------------------------------------------------------------------------
def _cbn_fused_kernel(x_ref, p_ref, y_ref, *, eps):
    """x_ref/y_ref: (N, 2, tf, HW); p_ref: (tf, 5) = [Wrr, Wri, Wii, Br, Bi]."""
    n, _, _, hw = x_ref.shape
    inv_l = jnp.float32(1.0 / (n * hw))

    # ---- pass 1: per-channel means (f32 temporaries die after the sums) ----
    mr = jnp.sum(x_ref[:, 0].astype(jnp.float32), axis=(0, 2), keepdims=True) * inv_l
    mi = jnp.sum(x_ref[:, 1].astype(jnp.float32), axis=(0, 2), keepdims=True) * inv_l

    # ---- pass 2: centered second moments (re-read the VMEM-resident block;
    #      well-conditioned, no E[x^2]-E[x]^2 cancellation) ----
    xr_c = x_ref[:, 0].astype(jnp.float32) - mr
    xi_c = x_ref[:, 1].astype(jnp.float32) - mi
    vrr = jnp.sum(xr_c * xr_c, axis=(0, 2), keepdims=True) * inv_l + eps
    vri = jnp.sum(xr_c * xi_c, axis=(0, 2), keepdims=True) * inv_l
    vii = jnp.sum(xi_c * xi_c, axis=(0, 2), keepdims=True) * inv_l + eps
    # xr_c / xi_c are dead past this point (nothing below uses them).

    # ---- inverse square root of the per-channel 2x2 covariance ----
    tau = vrr + vii
    delta = jnp.maximum(vrr * vii - vri * vri, jnp.float32(eps * eps))
    s = jnp.sqrt(delta)
    t = jnp.sqrt(tau + 2.0 * s)
    rst = 1.0 / (s * t)
    urr = (s + vii) * rst
    uii = (s + vrr) * rst
    uri = -vri * rst

    # ---- affine mixing (complex weight applied to the whitening matrix) ----
    p = p_ref[...].astype(jnp.float32)        # (tf, 5)
    wrr = p[:, 0:1]
    wri = p[:, 1:2]
    wii = p[:, 2:3]
    br = p[:, 3:4]
    bi = p[:, 4:5]

    zrr = wrr * urr + wri * uri               # (1, tf, 1)
    zri = wrr * uri + wri * uii
    zir = wri * urr + wii * uri
    zii = wri * uri + wii * uii

    # Fold the mean removal into the bias so the apply pass reads raw x
    # (no centered temporaries kept live for the apply).
    cr = br - (zrr * mr + zri * mi)
    ci = bi - (zir * mr + zii * mi)

    # ---- apply: re-read raw x from VMEM ----
    xr = x_ref[:, 0].astype(jnp.float32)
    xi = x_ref[:, 1].astype(jnp.float32)
    y_ref[:, 0] = (zrr * xr + zri * xi + cr).astype(y_ref.dtype)
    y_ref[:, 1] = (zir * xr + zii * xi + ci).astype(y_ref.dtype)


# --------------------------------------------------------------------------
# Split (two-stage) path: for blocks that do not fit the VMEM budget.
# Stage 1 accumulates per-channel sums over a (channel, N, HW-tile) grid,
# stage 2 is a tiny per-channel computation in plain JAX, stage 3 applies.
# --------------------------------------------------------------------------
def _cbn_stats_kernel(x_ref, s_ref, *, hw_total, t_hw):
    """x_ref: (1, 2, tf, t_hw); s_ref: (5, tf, 1) accumulator = [sr,si,srr,sri,sii]."""
    @pl.when((pl.program_id(1) == 0) & (pl.program_id(2) == 0))
    def _():
        s_ref[...] = jnp.zeros_like(s_ref)

    xr = x_ref[0, 0].astype(jnp.float32)      # (tf, t_hw)
    xi = x_ref[0, 1].astype(jnp.float32)

    if hw_total % t_hw != 0:
        # Boundary block along HW: mask padded lanes out of the sums.
        col = jax.lax.broadcasted_iota(jnp.int32, xr.shape, 1)
        valid = (pl.program_id(2) * t_hw + col) < hw_total
        xr = jnp.where(valid, xr, 0.0)
        xi = jnp.where(valid, xi, 0.0)

    s_ref[0] += jnp.sum(xr, axis=1, keepdims=True)
    s_ref[1] += jnp.sum(xi, axis=1, keepdims=True)
    s_ref[2] += jnp.sum(xr * xr, axis=1, keepdims=True)
    s_ref[3] += jnp.sum(xr * xi, axis=1, keepdims=True)
    s_ref[4] += jnp.sum(xi * xi, axis=1, keepdims=True)


def _cbn_apply_kernel(x_ref, p_ref, y_ref):
    """x_ref/y_ref: (1, 2, tf, t_hw); p_ref: (tf, 6) = [Zrr, Zri, Zir, Zii, Cr, Ci]."""
    p = p_ref[...].astype(jnp.float32)
    zrr = p[:, 0:1]
    zri = p[:, 1:2]
    zir = p[:, 2:3]
    zii = p[:, 3:4]
    cr = p[:, 4:5]
    ci = p[:, 5:6]

    xr = x_ref[0, 0].astype(jnp.float32)
    xi = x_ref[0, 1].astype(jnp.float32)
    y_ref[0, 0] = (zrr * xr + zri * xi + cr).astype(y_ref.dtype)
    y_ref[0, 1] = (zir * xr + zii * xi + ci).astype(y_ref.dtype)


# --------------------------------------------------------------------------
# VMEM / tiling policy.
# --------------------------------------------------------------------------
def _vmem_capacity_bytes():
    try:
        info = pltpu.get_tpu_info()
        for attr in ("vmem_capacity_bytes", "vmem_bytes", "vmem_size_bytes"):
            v = getattr(info, attr, None)
            if v:
                return int(v)
    except Exception:
        pass
    return 64 * 1024 * 1024   # conservative (v7x-sized) default if query fails


def _memory_policy(block_budget_bytes, vmem_limit_bytes):
    vmem_cap = _vmem_capacity_bytes()
    small_vmem = vmem_cap < 100 * 1024 * 1024          # v7x-class (64 MiB / TC)
    if block_budget_bytes is None:
        block_budget_bytes = (3 * 1024 * 1024 + 512 * 1024) if small_vmem \
            else 12 * 1024 * 1024
    if vmem_limit_bytes is None:
        vmem_limit_bytes = 40 * 1024 * 1024 if small_vmem else 96 * 1024 * 1024
    # v7x has 2 TensorCores: prefer >=2 parallel grid steps so neither idles.
    min_steps = 2 if small_vmem else 1
    return block_budget_bytes, vmem_limit_bytes, min_steps


def _channel_tile_candidates(num_features):
    """Channel tiles tf with F % tf == 0 and (tf % 8 == 0 or tf == F), so the
    sublane dim of every block obeys the (8, 128) rule."""
    cands = [d for d in range(8, num_features + 1, 8) if num_features % d == 0]
    if num_features not in cands:
        cands.append(num_features)
    return sorted(set(cands))


def _pick_fused_channel_tile(num_features, n, hw, itemsize, budget_bytes, min_steps):
    """Largest fitting channel tile for the fused path; None if nothing fits."""
    def block_bytes(tf):
        return 2 * n * tf * hw * itemsize

    fitting = [tf for tf in _channel_tile_candidates(num_features)
               if block_bytes(tf) <= budget_bytes]
    if not fitting:
        return None
    if min_steps > 1:
        multi = [tf for tf in fitting if num_features // tf >= min_steps]
        if multi:
            return max(multi)
    return max(fitting)


def _pick_split_tiles(num_features, hw, itemsize, budget_bytes):
    """(tf, t_hw) for the split path; one batch element per block (t_n = 1)."""
    cands = _channel_tile_candidates(num_features)
    tf_min = min(cands)

    def block_bytes(tf, thw):
        return 2 * tf * thw * itemsize

    if block_bytes(tf_min, hw) <= budget_bytes:
        # Keep the full, lane-dense HW extent and grow the channel tile.
        thw = hw
        tf = max(t for t in cands if block_bytes(t, hw) <= budget_bytes)
    else:
        tf = tf_min
        thw = max(128, (budget_bytes // (2 * tf * itemsize)) // 128 * 128)
        thw = min(thw, ((hw + 127) // 128) * 128)
    return tf, thw


# --------------------------------------------------------------------------
# Public forward.
# --------------------------------------------------------------------------
def _split_forward(x4, Wrr, Wri, Wii, Br, Bi, eps, budget_bytes, vmem_limit_bytes):
    N, _, F, HW = x4.shape
    itemsize = x4.dtype.itemsize
    tf, thw = _pick_split_tiles(F, HW, itemsize, budget_bytes)
    n_hw = pl.cdiv(HW, thw)
    grid = (F // tf, N, n_hw)

    x_spec = pl.BlockSpec((1, 2, tf, thw), lambda c, n, h: (n, 0, c, h))

    # Stage 1: per-channel sums accumulated across the (N, HW-tile) axes.
    # TODO(synk): for extreme dynamic ranges, add a 3-pass fully centered
    # variant (mean pass -> centered cov pass -> apply) at ~2x read traffic.
    stats = pl.pallas_call(
        functools.partial(_cbn_stats_kernel, hw_total=HW, t_hw=thw),
        out_shape=jax.ShapeDtypeStruct((5, F, 1), jnp.float32),
        grid_spec=pltpu.PrefetchScalarGridSpec(
            num_scalar_prefetch=0,
            grid=grid,
            in_specs=[x_spec],
            out_specs=pl.BlockSpec((5, tf, 1), lambda c, n, h: (0, c, 0)),
        ),
        compiler_params=pltpu.CompilerParams(
            dimension_semantics=("parallel", "arbitrary", "arbitrary"),
            vmem_limit_bytes=vmem_limit_bytes,
        ),
    )(x4)

    # Stage 2: tiny (F,)-sized per-channel math in plain JAX.
    sr, si, srr, sri, sii = (stats[k, :, 0] for k in range(5))
    cnt = jnp.float32(N * HW)
    mr, mi = sr / cnt, si / cnt
    vrr = jnp.maximum(srr / cnt - mr * mr, 0.0) + eps
    vri = sri / cnt - mr * mi
    vii = jnp.maximum(sii / cnt - mi * mi, 0.0) + eps
    tau = vrr + vii
    delta = jnp.maximum(vrr * vii - vri * vri, jnp.float32(eps * eps))
    s = jnp.sqrt(delta)
    t = jnp.sqrt(tau + 2.0 * s)
    rst = 1.0 / (s * t)
    urr, uii, uri = (s + vii) * rst, (s + vrr) * rst, -vri * rst

    wrr = Wrr.astype(jnp.float32)
    wri = Wri.astype(jnp.float32)
    wii = Wii.astype(jnp.float32)
    zrr = wrr * urr + wri * uri
    zri = wrr * uri + wri * uii
    zir = wri * urr + wii * uri
    zii = wri * uri + wii * uii
    cr = Br.astype(jnp.float32) - (zrr * mr + zri * mi)
    ci = Bi.astype(jnp.float32) - (zir * mr + zii * mi)
    params = jnp.stack([zrr, zri, zir, zii, cr, ci], axis=1)   # (F, 6)

    # Stage 3: lane-dense apply.
    y4 = pl.pallas_call(
        _cbn_apply_kernel,
        out_shape=jax.ShapeDtypeStruct(x4.shape, x4.dtype),
        grid_spec=pltpu.PrefetchScalarGridSpec(
            num_scalar_prefetch=0,
            grid=grid,
            in_specs=[x_spec, pl.BlockSpec((tf, 6), lambda c, n, h: (c, 0))],
            out_specs=pl.BlockSpec((1, 2, tf, thw), lambda c, n, h: (n, 0, c, h)),
        ),
        compiler_params=pltpu.CompilerParams(
            dimension_semantics=("parallel", "parallel", "parallel"),
            vmem_limit_bytes=vmem_limit_bytes,
        ),
    )(x4, params)
    return y4


def cbatchnorm2d_forward(x, Wrr, Wri, Wii, Br, Bi, *, eps=1e-5,
                         block_budget_bytes=None, vmem_limit_bytes=None):
    """x: (N, 2*F, H, W) -> (N, 2*F, H, W).

    Matches cBatchNorm2d.forward with affine=True, track_running_stats=False
    (batch statistics, i.e. the training-mode path).  Works for f32 and bf16 x
    (stats accumulated in f32 inside the kernel, output in x's dtype).
    """
    assert x.ndim == 4 and x.shape[1] % 2 == 0
    N, C2, H, W = x.shape
    F = C2 // 2
    HW = H * W

    # Free, contiguity-preserving view (no transpose, no concat).
    x4 = x.reshape(N, 2, F, HW)

    budget, vmem_limit, min_steps = _memory_policy(block_budget_bytes,
                                                   vmem_limit_bytes)

    tf = _pick_fused_channel_tile(F, N, HW, x.dtype.itemsize, budget, min_steps)
    if tf is not None:
        # Fused single-pass path: one HBM read + one write per element.
        params = jnp.stack([Wrr, Wri, Wii, Br, Bi], axis=1).astype(jnp.float32)
        y4 = pl.pallas_call(
            functools.partial(_cbn_fused_kernel, eps=float(eps)),
            out_shape=jax.ShapeDtypeStruct((N, 2, F, HW), x.dtype),
            grid_spec=pltpu.PrefetchScalarGridSpec(
                num_scalar_prefetch=0,
                grid=(F // tf,),
                in_specs=[pl.BlockSpec((N, 2, tf, HW), lambda c: (0, 0, c, 0)),
                          pl.BlockSpec((tf, 5), lambda c: (c, 0))],
                out_specs=pl.BlockSpec((N, 2, tf, HW), lambda c: (0, 0, c, 0)),
            ),
            compiler_params=pltpu.CompilerParams(
                dimension_semantics=("parallel",),
                vmem_limit_bytes=vmem_limit,
            ),
        )(x4, params)
    else:
        # Block too large for VMEM: two-stage split path (stats + apply).
        y4 = _split_forward(x4, Wrr, Wri, Wii, Br, Bi, float(eps),
                            budget, vmem_limit)

    return y4.reshape(N, C2, H, W)


# --------------------------------------------------------------------------
# Pure-JAX reference (mirrors the PyTorch forward, training / batch-stats).
# --------------------------------------------------------------------------
def _reference_jax(x, Wrr, Wri, Wii, Br, Bi, eps=1e-5):
    F = x.shape[1] // 2
    xr, xi = x[:, :F], x[:, F:]
    vdim = (1, F, 1, 1)
    Mr = jnp.mean(xr, axis=(0, 2, 3), keepdims=True)
    Mi = jnp.mean(xi, axis=(0, 2, 3), keepdims=True)
    xr, xi = xr - Mr, xi - Mi
    Vrr = jnp.mean(xr * xr, axis=(0, 2, 3), keepdims=True) + eps
    Vri = jnp.mean(xr * xi, axis=(0, 2, 3), keepdims=True)
    Vii = jnp.mean(xi * xi, axis=(0, 2, 3), keepdims=True) + eps
    tau = Vrr + Vii
    delta = Vrr * Vii - Vri * Vri
    s = jnp.sqrt(delta)
    t = jnp.sqrt(tau + 2 * s)
    rst = 1.0 / (s * t)
    Urr, Uii, Uri = (s + Vii) * rst, (s + Vrr) * rst, -Vri * rst
    Wrr_, Wri_, Wii_ = Wrr.reshape(vdim), Wri.reshape(vdim), Wii.reshape(vdim)
    Zrr = Wrr_ * Urr + Wri_ * Uri
    Zri = Wrr_ * Uri + Wri_ * Uii
    Zir = Wri_ * Urr + Wii_ * Uri
    Zii = Wri_ * Uri + Wii_ * Uii
    yr = Zrr * xr + Zri * xi + Br.reshape(vdim)
    yi = Zir * xr + Zii * xi + Bi.reshape(vdim)
    return jnp.concatenate([yr, yi], axis=1)


if __name__ == "__main__":
    key = jax.random.PRNGKey(0)
    N, C2, H, W = 2, 4, 16, 16          # 4 channels -> num_features = 2
    F = C2 // 2

    k_x, k_wri, k_b = jax.random.split(key, 3)
    # Non-zero per-channel mean so the centering / mean-folding is exercised.
    x = jax.random.normal(k_x, (N, C2, H, W), dtype=jnp.float32) * 0.5 + 1.5

    # reset_parameters(): Wrr=1, Wii=1, Wri ~ U(-0.9, 0.9); use non-zero biases
    # to exercise the full affine path.
    Wrr = jnp.ones((F,), jnp.float32)
    Wii = jnp.ones((F,), jnp.float32)
    Wri = jax.random.uniform(k_wri, (F,), jnp.float32, minval=-0.9, maxval=0.9)
    Br = 0.1 * jax.random.normal(k_b, (F,), jnp.float32)
    Bi = -0.05 * jnp.ones((F,), jnp.float32)

    ref = _reference_jax(x, Wrr, Wri, Wii, Br, Bi)

    # Fused single-pass path (default, generation-aware budgets).
    out = cbatchnorm2d_forward(x, Wrr, Wri, Wii, Br, Bi)
    out = jax.block_until_ready(out)
    assert out.shape == (N, C2, H, W)
    assert jnp.allclose(out, ref, rtol=1e-4, atol=1e-4), "fused path mismatch"

    # Force the two-stage split path with a tiny block budget to exercise the
    # stats-accumulation + apply kernels (channel, batch and HW tiling).
    out2 = cbatchnorm2d_forward(x, Wrr, Wri, Wii, Br, Bi,
                                block_budget_bytes=2048)
    out2 = jax.block_until_ready(out2)
    assert jnp.allclose(out2, ref, rtol=1e-4, atol=1e-4), "split path mismatch"

    print("KERNEL_OK")
</pallas_src>

<mosaic_0001>
module attributes {stable_mosaic.version = 11 : i64} {
  func.func @_cbn_fused_kernel(%arg0: i32, %arg1: memref<2x2x2x256xf32, #tpu.memory_space<vmem>>, %arg2: memref<2x5xf32, #tpu.memory_space<vmem>>, %arg3: memref<2x2x2x256xf32, #tpu.memory_space<vmem>>) attributes {dimension_semantics = [#tpu.dimension_semantics<parallel>], iteration_bounds = array<i64: 1>, scalar_prefetch = 0 : i64, scratch_operands = 0 : i64, tpu.core_type = #tpu.core_type<tc>, window_params = [{transform_indices = @transform_0, window_bounds = array<i64: 2, 2, 2, 256>}, {transform_indices = @transform_1, window_bounds = array<i64: 2, 5>}, {transform_indices = @transform_2, window_bounds = array<i64: 2, 2, 2, 256>}]} {
    %c0 = arith.constant 0 : index
    %c0_0 = arith.constant 0 : index
    %c0_1 = arith.constant 0 : index
    %c0_2 = arith.constant 0 : index
    %0 = vector.load %arg1[%c0, %c0_0, %c0_1, %c0_2] : memref<2x2x2x256xf32, #tpu.memory_space<vmem>>, vector<2x1x2x256xf32>
    %1 = vector.shape_cast %0 : vector<2x1x2x256xf32> to vector<2x2x256xf32>
    %cst = arith.constant dense<0.000000e+00> : vector<2xf32>
    %2 = vector.multi_reduction <add>, %1, %cst [0, 2] : vector<2x2x256xf32> to vector<2xf32>
    %3 = vector.shape_cast %2 : vector<2xf32> to vector<1x2x1xf32>
    %cst_3 = arith.constant 0.001953125 : f32
    %4 = vector.broadcast %cst_3 : f32 to vector<1x2x1xf32>
    %5 = arith.mulf %3, %4 : vector<1x2x1xf32>
    %c0_4 = arith.constant 0 : index
    %c1 = arith.constant 1 : index
    %c0_5 = arith.constant 0 : index
    %c0_6 = arith.constant 0 : index
    %6 = vector.load %arg1[%c0_4, %c1, %c0_5, %c0_6] : memref<2x2x2x256xf32, #tpu.memory_space<vmem>>, vector<2x1x2x256xf32>
    %7 = vector.shape_cast %6 : vector<2x1x2x256xf32> to vector<2x2x256xf32>
    %cst_7 = arith.constant dense<0.000000e+00> : vector<2xf32>
    %8 = vector.multi_reduction <add>, %7, %cst_7 [0, 2] : vector<2x2x256xf32> to vector<2xf32>
    %9 = vector.shape_cast %8 : vector<2xf32> to vector<1x2x1xf32>
    %cst_8 = arith.constant 0.001953125 : f32
    %10 = vector.broadcast %cst_8 : f32 to vector<1x2x1xf32>
    %11 = arith.mulf %9, %10 : vector<1x2x1xf32>
    %c0_9 = arith.constant 0 : index
    %c0_10 = arith.constant 0 : index
    %c0_11 = arith.constant 0 : index
    %c0_12 = arith.constant 0 : index
    %12 = vector.load %arg1[%c0_9, %c0_10, %c0_11, %c0_12] : memref<2x2x2x256xf32, #tpu.memory_space<vmem>>, vector<2x1x2x256xf32>
    %13 = vector.shape_cast %12 : vector<2x1x2x256xf32> to vector<2x2x256xf32>
    %14 = vector.broadcast %5 : vector<1x2x1xf32> to vector<2x2x256xf32>
    %15 = arith.subf %13, %14 : vector<2x2x256xf32>
    %c0_13 = arith.constant 0 : index
    %c1_14 = arith.constant 1 : index
    %c0_15 = arith.constant 0 : index
    %c0_16 = arith.constant 0 : index
    %16 = vector.load %arg1[%c0_13, %c1_14, %c0_15, %c0_16] : memref<2x2x2x256xf32, #tpu.memory_space<vmem>>, vector<2x1x2x256xf32>
    %17 = vector.shape_cast %16 : vector<2x1x2x256xf32> to vector<2x2x256xf32>
    %18 = vector.broadcast %11 : vector<1x2x1xf32> to vector<2x2x256xf32>
    %19 = arith.subf %17, %18 : vector<2x2x256xf32>
    %20 = arith.mulf %15, %15 : vector<2x2x256xf32>
    %cst_17 = arith.constant dense<0.000000e+00> : vector<2xf32>
    %21 = vector.multi_reduction <add>, %20, %cst_17 [0, 2] : vector<2x2x256xf32> to vector<2xf32>
    %22 = vector.shape_cast %21 : vector<2xf32> to vector<1x2x1xf32>
    %cst_18 = arith.constant 0.001953125 : f32
    %23 = vector.broadcast %cst_18 : f32 to vector<1x2x1xf32>
    %24 = arith.mulf %22, %23 : vector<1x2x1xf32>
    %cst_19 = arith.constant 9.99999974E-6 : f32
    %25 = vector.broadcast %cst_19 : f32 to vector<1x2x1xf32>
    %26 = arith.addf %24, %25 : vector<1x2x1xf32>
    %27 = arith.mulf %15, %19 : vector<2x2x256xf32>
    %cst_20 = arith.constant dense<0.000000e+00> : vector<2xf32>
    %28 = vector.multi_reduction <add>, %27, %cst_20 [0, 2] : vector<2x2x256xf32> to vector<2xf32>
    %29 = vector.shape_cast %28 : vector<2xf32> to vector<1x2x1xf32>
    %cst_21 = arith.constant 0.001953125 : f32
    %30 = vector.broadcast %cst_21 : f32 to vector<1x2x1xf32>
    %31 = arith.mulf %29, %30 : vector<1x2x1xf32>
    %32 = arith.mulf %19, %19 : vector<2x2x256xf32>
    %cst_22 = arith.constant dense<0.000000e+00> : vector<2xf32>
    %33 = vector.multi_reduction <add>, %32, %cst_22 [0, 2] : vector<2x2x256xf32> to vector<2xf32>
    %34 = vector.shape_cast %33 : vector<2xf32> to vector<1x2x1xf32>
    %cst_23 = arith.constant 0.001953125 : f32
    %35 = vector.broadcast %cst_23 : f32 to vector<1x2x1xf32>
    %36 = arith.mulf %34, %35 : vector<1x2x1xf32>
    %cst_24 = arith.constant 9.99999974E-6 : f32
    %37 = vector.broadcast %cst_24 : f32 to vector<1x2x1xf32>
    %38 = arith.addf %36, %37 : vector<1x2x1xf32>
    %39 = arith.addf %26, %38 : vector<1x2x1xf32>
    %40 = arith.mulf %26, %38 : vector<1x2x1xf32>
    %41 = arith.mulf %31, %31 : vector<1x2x1xf32>
    %42 = arith.subf %40, %41 : vector<1x2x1xf32>
    %cst_25 = arith.constant 1.000000e-10 : f32
    %43 = vector.broadcast %cst_25 : f32 to vector<1x2x1xf32>
    %44 = arith.maximumf %42, %43 : vector<1x2x1xf32>
    %45 = math.sqrt %44 : vector<1x2x1xf32>
    %cst_26 = arith.constant 2.000000e+00 : f32
    %46 = vector.broadcast %cst_26 : f32 to vector<1x2x1xf32>
    %47 = arith.mulf %46, %45 : vector<1x2x1xf32>
    %48 = arith.addf %39, %47 : vector<1x2x1xf32>
    %49 = math.sqrt %48 : vector<1x2x1xf32>
    %50 = arith.mulf %45, %49 : vector<1x2x1xf32>
    %cst_27 = arith.constant 1.000000e+00 : f32
    %51 = vector.broadcast %cst_27 : f32 to vector<1x2x1xf32>
    %52 = arith.divf %51, %50 : vector<1x2x1xf32>
    %53 = arith.addf %45, %38 : vector<1x2x1xf32>
    %54 = arith.mulf %53, %52 : vector<1x2x1xf32>
    %55 = arith.addf %45, %26 : vector<1x2x1xf32>
    %56 = arith.mulf %55, %52 : vector<1x2x1xf32>
    %cst_28 = arith.constant 0.000000e+00 : f32
    %57 = vector.broadcast %cst_28 : f32 to vector<1x2x1xf32>
    %58 = arith.subf %57, %31 : vector<1x2x1xf32>
    %59 = arith.mulf %58, %52 : vector<1x2x1xf32>
    %c0_29 = arith.constant 0 : index
    %c0_30 = arith.constant 0 : index
    %60 = vector.load %arg2[%c0_29, %c0_30] : memref<2x5xf32, #tpu.memory_space<vmem>>, vector<2x5xf32>
    %61 = vector.extract_strided_slice %60 {offsets = [0, 0], sizes = [2, 1], strides = [1, 1]} : vector<2x5xf32> to vector<2x1xf32>
    %62 = vector.extract_strided_slice %60 {offsets = [0, 1], sizes = [2, 1], strides = [1, 1]} : vector<2x5xf32> to vector<2x1xf32>
    %63 = vector.extract_strided_slice %60 {offsets = [0, 2], sizes = [2, 1], strides = [1, 1]} : vector<2x5xf32> to vector<2x1xf32>
    %64 = vector.extract_strided_slice %60 {offsets = [0, 3], sizes = [2, 1], strides = [1, 1]} : vector<2x5xf32> to vector<2x1xf32>
    %65 = vector.extract_strided_slice %60 {offsets = [0, 4], sizes = [2, 1], strides = [1, 1]} : vector<2x5xf32> to vector<2x1xf32>
    %66 = vector.shape_cast %61 : vector<2x1xf32> to vector<1x2x1xf32>
    %67 = arith.mulf %66, %54 : vector<1x2x1xf32>
    %68 = vector.shape_cast %62 : vector<2x1xf32> to vector<1x2x1xf32>
    %69 = arith.mulf %68, %59 : vector<1x2x1xf32>
    %70 = arith.addf %67, %69 : vector<1x2x1xf32>
    %71 = vector.shape_cast %61 : vector<2x1xf32> to vector<1x2x1xf32>
    %72 = arith.mulf %71, %59 : vector<1x2x1xf32>
    %73 = vector.shape_cast %62 : vector<2x1xf32> to vector<1x2x1xf32>
    %74 = arith.mulf %73, %56 : vector<1x2x1xf32>
    %75 = arith.addf %72, %74 : vector<1x2x1xf32>
    %76 = vector.shape_cast %62 : vector<2x1xf32> to vector<1x2x1xf32>
    %77 = arith.mulf %76, %54 : vector<1x2x1xf32>
    %78 = vector.shape_cast %63 : vector<2x1xf32> to vector<1x2x1xf32>
    %79 = arith.mulf %78, %59 : vector<1x2x1xf32>
    %80 = arith.addf %77, %79 : vector<1x2x1xf32>
    %81 = vector.shape_cast %62 : vector<2x1xf32> to vector<1x2x1xf32>
    %82 = arith.mulf %81, %59 : vector<1x2x1xf32>
    %83 = vector.shape_cast %63 : vector<2x1xf32> to vector<1x2x1xf32>
    %84 = arith.mulf %83, %56 : vector<1x2x1xf32>
    %85 = arith.addf %82, %84 : vector<1x2x1xf32>
    %86 = arith.mulf %70, %5 : vector<1x2x1xf32>
    %87 = arith.mulf %75, %11 : vector<1x2x1xf32>
    %88 = arith.addf %86, %87 : vector<1x2x1xf32>
    %89 = vector.shape_cast %64 : vector<2x1xf32> to vector<1x2x1xf32>
    %90 = arith.subf %89, %88 : vector<1x2x1xf32>
    %91 = arith.mulf %80, %5 : vector<1x2x1xf32>
    %92 = arith.mulf %85, %11 : vector<1x2x1xf32>
    %93 = arith.addf %91, %92 : vector<1x2x1xf32>
    %94 = vector.shape_cast %65 : vector<2x1xf32> to vector<1x2x1xf32>
    %95 = arith.subf %94, %93 : vector<1x2x1xf32>
    %c0_31 = arith.constant 0 : index
    %c0_32 = arith.constant 0 : index
    %c0_33 = arith.constant 0 : index
    %c0_34 = arith.constant 0 : index
    %96 = vector.load %arg1[%c0_31, %c0_32, %c0_33, %c0_34] : memref<2x2x2x256xf32, #tpu.memory_space<vmem>>, vector<2x1x2x256xf32>
    %97 = vector.shape_cast %96 : vector<2x1x2x256xf32> to vector<2x2x256xf32>
    %c0_35 = arith.constant 0 : index
    %c1_36 = arith.constant 1 : index
    %c0_37 = arith.constant 0 : index
    %c0_38 = arith.constant 0 : index
    %98 = vector.load %arg1[%c0_35, %c1_36, %c0_37, %c0_38] : memref<2x2x2x256xf32, #tpu.memory_space<vmem>>, vector<2x1x2x256xf32>
    %99 = vector.shape_cast %98 : vector<2x1x2x256xf32> to vector<2x2x256xf32>
    %100 = vector.broadcast %70 : vector<1x2x1xf32> to vector<2x2x256xf32>
    %101 = arith.mulf %100, %97 : vector<2x2x256xf32>
    %102 = vector.broadcast %75 : vector<1x2x1xf32> to vector<2x2x256xf32>
    %103 = arith.mulf %102, %99 : vector<2x2x256xf32>
    %104 = arith.addf %101, %103 : vector<2x2x256xf32>
    %105 = vector.broadcast %90 : vector<1x2x1xf32> to vector<2x2x256xf32>
    %106 = arith.addf %104, %105 : vector<2x2x256xf32>
    %c0_39 = arith.constant 0 : index
    %c0_40 = arith.constant 0 : index
    %c0_41 = arith.constant 0 : index
    %c0_42 = arith.constant 0 : index
    %107 = vector.load %arg3[%c0_39, %c0_40, %c0_41, %c0_42] : memref<2x2x2x256xf32, #tpu.memory_space<vmem>>, vector<2x1x2x256xf32>
    %108 = vector.shape_cast %107 : vector<2x1x2x256xf32> to vector<2x2x256xf32>
    %109 = vector.shape_cast %106 : vector<2x2x256xf32> to vector<2x1x2x256xf32>
    tpu.vector_store %arg3[%c0_39, %c0_40, %c0_41, %c0_42], %109 {strides = array<i32>} : memref<2x2x2x256xf32, #tpu.memory_space<vmem>>, vector<2x1x2x256xf32>,
    %110 = vector.broadcast %80 : vector<1x2x1xf32> to vector<2x2x256xf32>
    %111 = arith.mulf %110, %97 : vector<2x2x256xf32>
    %112 = vector.broadcast %85 : vector<1x2x1xf32> to vector<2x2x256xf32>
    %113 = arith.mulf %112, %99 : vector<2x2x256xf32>
    %114 = arith.addf %111, %113 : vector<2x2x256xf32>
    %115 = vector.broadcast %95 : vector<1x2x1xf32> to vector<2x2x256xf32>
    %116 = arith.addf %114, %115 : vector<2x2x256xf32>
    %c0_43 = arith.constant 0 : index
    %c1_44 = arith.constant 1 : index
    %c0_45 = arith.constant 0 : index
    %c0_46 = arith.constant 0 : index
    %117 = vector.load %arg3[%c0_43, %c1_44, %c0_45, %c0_46] : memref<2x2x2x256xf32, #tpu.memory_space<vmem>>, vector<2x1x2x256xf32>
    %118 = vector.shape_cast %117 : vector<2x1x2x256xf32> to vector<2x2x256xf32>
    %119 = vector.shape_cast %116 : vector<2x2x256xf32> to vector<2x1x2x256xf32>
    tpu.vector_store %arg3[%c0_43, %c1_44, %c0_45, %c0_46], %119 {strides = array<i32>} : memref<2x2x2x256xf32, #tpu.memory_space<vmem>>, vector<2x1x2x256xf32>,
    return
  }
  func.func @transform_0(%arg0: i32) -> (i32, i32, i32, i32) {
    %c0_i32 = arith.constant 0 : i32
    %c0_i32_0 = arith.constant 0 : i32
    %c0_i32_1 = arith.constant 0 : i32
    %c0_i32_2 = arith.constant 0 : i32
    return %c0_i32, %c0_i32_0, %arg0, %c0_i32_1 : i32, i32, i32, i32
  }
  func.func @transform_1(%arg0: i32) -> (i32, i32) {
    %c0_i32 = arith.constant 0 : i32
    %c0_i32_0 = arith.constant 0 : i32
    return %arg0, %c0_i32 : i32, i32
  }
  func.func @transform_2(%arg0: i32) -> (i32, i32, i32, i32) {
    %c0_i32 = arith.constant 0 : i32
    %c0_i32_0 = arith.constant 0 : i32
    %c0_i32_1 = arith.constant 0 : i32
    %c0_i32_2 = arith.constant 0 : i32
    return %c0_i32, %c0_i32_0, %arg0, %c0_i32_1 : i32, i32, i32, i32
  }
}

</mosaic_0001>

<llo_original>
// kernel: tpu_custom_call.1
$region0: #{tpu_custom_call.1}
  #allocation0 [shape = 'u32[]', space=smem, size = 0x4, offset = 0x4, fixed_abs, tag = 'smem constant byte address 0x4 - core index']
  #allocation1 [shape = 'u32[144,128]{1,0:T(1,128)}', space=vmem, size = 0x12000, scoped, tag = 'internal scratch']
  %s0 = inlined_call_operand.hbm [shape: f32[2,2,2,256], index: 0, kind: input, shape index: {}]
  %s1 = inlined_call_operand.hbm [shape: f32[2,5], index: 1, kind: input, shape index: {}]
  %s2 = inlined_call_operand.hbm [shape: f32[2,2,2,256], index: 2, kind: output, shape index: {}]
  %s3 = sld [smem:[#allocation0]]
  $region26: #{tpu_custom_call.1} parent=0
    _
  %s5 = ssub.s32 1, %s3
  %s6 = scalar_select 0, %s5, %s3
  $region1: #{tpu_custom_call.1} parent=0
    #allocation2 [shape = 'u8[8192]{0}', space=vmem, size = 0x2000, scoped, tag = 'input window, operand 0, single buffered']
    #allocation3 [shape = 's32[1]{0}', space=sflag, size = 0x4, scoped, tag = 'scoped memory for tpu_custom_call.1']
    #allocation4 [shape = 's32[1]{0}', space=sflag, size = 0x4, scoped, tag = 'scoped memory for tpu_custom_call.1']
    #allocation5 [shape = 'u8[1024]{0}', space=vmem, size = 0x400, scoped, tag = 'input window, operand 1, single buffered']
    #allocation6 [shape = 's32[1]{0}', space=sflag, size = 0x4, scoped, tag = 'scoped memory for tpu_custom_call.1']
    #allocation7 [shape = 'u8[8192]{0}', space=vmem, size = 0x2000, scoped, tag = 'output window, operand 0, single buffered']
    %7 = vsyncpa [#allocation3], 0
    %8 = vsyncpa [#allocation6], 0
    %9 = vsyncpa [#allocation4], 0
    // Predicated region
    $region2: #{tpu_custom_call.1} parent=1 // pred_check
      _
    $region3: #{tpu_custom_call.1} parent=1 // pred_check_branch
      %11 = sbr.rel (0) target = $region5
    $region4: #{tpu_custom_call.1} parent=1 // pred_region
      %s13 = ssub.s32 256, 256
      %14 = vsyncadd [#allocation3], %s13
      %s15 = sshll.u32 [#allocation2], 4
      %s16 = int_to_ptr.vmem [resolvable:$true] %s15
      %21 = dma.hbm_to_vmem [thread:$0]  %s0, 256, %s16, [#allocation3], 64, 64, 4
    $region5: #{tpu_custom_call.1} parent=1 // pred_fallthru
      _
    // Predicated region
    $region6: #{tpu_custom_call.1} parent=1 // pred_check
      _
    $region7: #{tpu_custom_call.1} parent=1 // pred_check_branch
      %23 = sbr.rel (0) target = $region9
    $region8: #{tpu_custom_call.1} parent=1 // pred_region
      %s25 = ssub.s32 32, 32
      %26 = vsyncadd [#allocation6], %s25
      %s28 = sshll.u32 [#allocation5], 4
      %s29 = int_to_ptr.vmem [resolvable:$true] %s28
      %31 = dma.hbm_to_vmem [thread:$0]  %s1, 32, %s29, [#allocation6]
    $region9: #{tpu_custom_call.1} parent=1 // pred_fallthru
      _
    // Predicated region
    $region10: #{tpu_custom_call.1} parent=1 // pred_check
      _
    $region11: #{tpu_custom_call.1} parent=1 // pred_check_branch
      %33 = sbr.rel (0) target = $region13
    $region12: #{tpu_custom_call.1} parent=1 // pred_region
      %34 = dma.done [#allocation3], 256
    $region13: #{tpu_custom_call.1} parent=1 // pred_fallthru
      _
    // Predicated region
    $region14: #{tpu_custom_call.1} parent=1 // pred_check
      _
    $region15: #{tpu_custom_call.1} parent=1 // pred_check_branch
      %36 = sbr.rel (0) target = $region17
    $region16: #{tpu_custom_call.1} parent=1 // pred_region
      %37 = dma.done [#allocation6], 32
    $region17: #{tpu_custom_call.1} parent=1 // pred_fallthru
      _
    %v38 = vld [vmem:[#allocation2] sm:$0xf]
    %v39 = vld [vmem:[#allocation2 + $0x8] sm:$0xf]
    %v43 = vunpack.c.l.s4 1983009808
    %v44 = vunpack.c.0.s8 %v43
    %v45 = vlaneseq
    %v46 = vshrl.u32 %v45, 7
    %v47 = vsub.s32 %v44, %v46
    %v48 = vrot.slane %v38, %v47
    %v49 = vcombine.high %v48, %v48
    %v51 = vunpack.c.l.s4 1983009808
    %v52 = vunpack.c.0.s8 %v51
    %v53 = vlaneseq
    %v54 = vshrl.u32 %v53, 7
    %v55 = vsub.s32 %v52, %v54
    %v56 = vrot.slane %v39, %v55
    %v57 = vcombine.high %v56, %v56
    %vm62 = vcmask 1041408
    %v63 = vsel %vm62, %v48, 0.0
    %v64 = vsel %vm62, %v49, 0.0
    %v65 = vadd.f32 %v63, %v64
    %v66 = vsel %vm62, %v56, 0.0
    %v67 = vadd.f32 %v65, %v66
    %v68 = vsel %vm62, %v57, 0.0
    %v69 = vadd.f32 %v67, %v68
    %70 = vadd.xlane.f32.xlu0 %v69
    %v71 = vpop.xlane.xlu0 %70
    %v72 = vmul.f32 %v71, 0.001953125
    %s73 = scalar_lea.vmem [#allocation2], 4
    %v74 = vld [vmem:[%s73] sm:$0xf]
    %v75 = vld [vmem:[%s73 + $0x8] sm:$0xf]
    %v79 = vunpack.c.l.s4 1983009808
    %v80 = vunpack.c.0.s8 %v79
    %v81 = vlaneseq
    %v82 = vshrl.u32 %v81, 7
    %v83 = vsub.s32 %v80, %v82
    %v84 = vrot.slane %v74, %v83
    %v85 = vcombine.high %v84, %v84
    %v87 = vunpack.c.l.s4 1983009808
    %v88 = vunpack.c.0.s8 %v87
    %v89 = vlaneseq
    %v90 = vshrl.u32 %v89, 7
    %v91 = vsub.s32 %v88, %v90
    %v92 = vrot.slane %v75, %v91
    %v93 = vcombine.high %v92, %v92
    %v98 = vsel %vm62, %v84, 0.0
    %v99 = vsel %vm62, %v85, 0.0
    %v100 = vadd.f32 %v98, %v99
    %v101 = vsel %vm62, %v92, 0.0
    %v102 = vadd.f32 %v100, %v101
    %v103 = vsel %vm62, %v93, 0.0
    %v104 = vadd.f32 %v102, %v103
    %105 = vadd.xlane.f32.xlu0 %v104
    %v106 = vpop.xlane.xlu0 %105
    %v107 = vmul.f32 %v106, 0.001953125
    %v110 = vunpack.c.l.s4 269488144
    %v111 = vunpack.c.0.s8 %v110
    %v112 = vlaneseq
    %v113 = vshrl.u32 %v112, 7
    %v114 = vsub.s32 %v111, %v113
    %v115 = vrot.slane %v72, %v114
    %v117 = vsub.f32 %v38, %v115
    %v118 = vsub.f32 %v39, %v115
    %v121 = vunpack.c.l.s4 269488144
    %v122 = vunpack.c.0.s8 %v121
    %v123 = vlaneseq
    %v124 = vshrl.u32 %v123, 7
    %v125 = vsub.s32 %v122, %v124
    %v126 = vrot.slane %v107, %v125
    %v128 = vsub.f32 %v74, %v126
    %v129 = vsub.f32 %v75, %v126
    %v130 = vmul.f32 %v117, %v117
    %v131 = vmul.f32 %v118, %v118
    %v135 = vunpack.c.l.s4 1983009808
    %v136 = vunpack.c.0.s8 %v135
    %v137 = vlaneseq
    %v138 = vshrl.u32 %v137, 7
    %v139 = vsub.s32 %v136, %v138
    %v140 = vrot.slane %v130, %v139
    %v141 = vcombine.high %v140, %v140
    %v143 = vunpack.c.l.s4 1983009808
    %v144 = vunpack.c.0.s8 %v143
    %v145 = vlaneseq
    %v146 = vshrl.u32 %v145, 7
    %v147 = vsub.s32 %v144, %v146
    %v148 = vrot.slane %v131, %v147
    %v149 = vcombine.high %v148, %v148
    %v154 = vsel %vm62, %v140, 0.0
    %v155 = vsel %vm62, %v141, 0.0
    %v156 = vadd.f32 %v154, %v155
    %v157 = vsel %vm62, %v148, 0.0
    %v158 = vadd.f32 %v156, %v157
    %v159 = vsel %vm62, %v149, 0.0
    %v160 = vadd.f32 %v158, %v159
    %161 = vadd.xlane.f32.xlu0 %v160
    %v162 = vpop.xlane.xlu0 %161
    %v163 = vmul.f32 %v162, 0.001953125
    %v164 = vadd.f32 %v163, 1e-05
    %v165 = vmul.f32 %v117, %v128
    %v166 = vmul.f32 %v118, %v129
    %v170 = vunpack.c.l.s4 1983009808
    %v171 = vunpack.c.0.s8 %v170
    %v172 = vlaneseq
    %v173 = vshrl.u32 %v172, 7
    %v174 = vsub.s32 %v171, %v173
    %v175 = vrot.slane %v165, %v174
    %v176 = vcombine.high %v175, %v175
    %v178 = vunpack.c.l.s4 1983009808
    %v179 = vunpack.c.0.s8 %v178
    %v180 = vlaneseq
    %v181 = vshrl.u32 %v180, 7
    %v182 = vsub.s32 %v179, %v181
    %v183 = vrot.slane %v166, %v182
    %v184 = vcombine.high %v183, %v183
    %v189 = vsel %vm62, %v175, 0.0
    %v190 = vsel %vm62, %v176, 0.0
    %v191 = vadd.f32 %v189, %v190
    %v192 = vsel %vm62, %v183, 0.0
    %v193 = vadd.f32 %v191, %v192
    %v194 = vsel %vm62, %v184, 0.0
    %v195 = vadd.f32 %v193, %v194
    %196 = vadd.xlane.f32.xlu0 %v195
    %v197 = vpop.xlane.xlu0 %196
    %v198 = vmul.f32 %v197, 0.001953125
    %v199 = vmul.f32 %v128, %v128
    %v200 = vmul.f32 %v129, %v129
    %v204 = vunpack.c.l.s4 1983009808
    %v205 = vunpack.c.0.s8 %v204
    %v206 = vlaneseq
    %v207 = vshrl.u32 %v206, 7
    %v208 = vsub.s32 %v205, %v207
    %v209 = vrot.slane %v199, %v208
    %v210 = vcombine.high %v209, %v209
    %v212 = vunpack.c.l.s4 1983009808
    %v213 = vunpack.c.0.s8 %v212
    %v214 = vlaneseq
    %v215 = vshrl.u32 %v214, 7
    %v216 = vsub.s32 %v213, %v215
    %v217 = vrot.slane %v200, %v216
    %v218 = vcombine.high %v217, %v217
    %v223 = vsel %vm62, %v209, 0.0
    %v224 = vsel %vm62, %v210, 0.0
    %v225 = vadd.f32 %v223, %v224
    %v226 = vsel %vm62, %v217, 0.0
    %v227 = vadd.f32 %v225, %v226
    %v228 = vsel %vm62, %v218, 0.0
    %v229 = vadd.f32 %v227, %v228
    %230 = vadd.xlane.f32.xlu0 %v229
    %v231 = vpop.xlane.xlu0 %230
    %v232 = vmul.f32 %v231, 0.001953125
    %v233 = vadd.f32 %v232, 1e-05
    %v234 = vadd.f32 %v164, %v233
    %v235 = vmul.f32 %v164, %v233
    %v236 = vmul.f32 %v198, %v198
    %v237 = vsub.f32 %v235, %v236
    %v238 = vmax.f32 %v237, 1e-10
    %v239 = vrsqrt.pop %v238
    %v240 = vmul.f32 %v238, %v239
    %vm241 = vcmp.eq.f32.partialorder %v238, inf
    %v242 = vsel %vm241, %v238, %v240
    %vm243 = vcmp.eq.f32.partialorder %v238, 0.0
    %v244 = vand.u32 %v238, 2147483648
    %v245 = vsel %vm243, %v244, %v242
    %v246 = vmul.f32 %v245, 2.0
    %v247 = vadd.f32 %v234, %v246
    %v248 = vrsqrt.pop %v247
    %v249 = vmul.f32 %v247, %v248
    %vm250 = vcmp.eq.f32.partialorder %v247, inf
    %v251 = vsel %vm250, %v247, %v249
    %vm252 = vcmp.eq.f32.partialorder %v247, 0.0
    %v253 = vand.u32 %v247, 2147483648
    %v254 = vsel %vm252, %v253, %v251
    %v255 = vmul.f32 %v245, %v254
    %v256 = vrcp.pop %v255
    %v257 = vmul.f32 1.0, %v256
    %v258 = vadd.f32 %v245, %v233
    %v259 = vmul.f32 %v258, %v257
    %v260 = vadd.f32 %v245, %v164
    %v261 = vmul.f32 %v260, %v257
    %v262 = vsub.f32 0.0, %v198
    %v263 = vmul.f32 %v262, %v257
    %v264 = vld [vmem:[#allocation5] sm:$0x3]
    %v265 = vmul.f32 %v264, %v259
    %v266 = vmul.f32 %v264, %v263
    %268 = vrot.lane.b32.xlu0 %v266, 127
    %v269 = vpop.permute.xlu0 %268
    %v271 = vadd.f32 %v265, %v269
    %v272 = vmul.f32 %v264, %v261
    %274 = vrot.lane.b32.xlu0 %v272, 127
    %v275 = vpop.permute.xlu0 %274
    %v277 = vadd.f32 %v266, %v275
    %v278 = vmul.f32 %v271, %v72
    %v279 = vmul.f32 %v277, %v107
    %v280 = vadd.f32 %v278, %v279
    %282 = vrot.lane.b32.xlu0 %v280, 3
    %v283 = vpop.permute.xlu0 %282
    %v285 = vsub.f32 %v264, %v283
    %287 = vset.pattern.permute.xlu0 0
    %288 = vperm.xlu0 %287, %v271
    %v289 = vpop.permute.xlu0 %288
    %v291 = vmul.f32 %v289, %v48
    %v292 = vmul.f32 %v289, %v49
    %v293 = vmul.f32 %v289, %v56
    %v294 = vmul.f32 %v289, %v57
    %296 = vset.pattern.permute.xlu0 0
    %297 = vperm.xlu0 %296, %v277
    %v298 = vpop.permute.xlu0 %297
    %v300 = vmul.f32 %v298, %v84
    %v301 = vmul.f32 %v298, %v85
    %v302 = vmul.f32 %v298, %v92
    %v303 = vmul.f32 %v298, %v93
    %v304 = vadd.f32 %v291, %v300
    %v305 = vadd.f32 %v292, %v301
    %v306 = vadd.f32 %v293, %v302
    %v307 = vadd.f32 %v294, %v303
    %309 = vset.pattern.permute.xlu0 3
    %310 = vperm.xlu0 %309, %v285
    %v311 = vpop.permute.xlu0 %310
    %v313 = vadd.f32 %v304, %v311
    %v314 = vadd.f32 %v305, %v311
    %v315 = vadd.f32 %v306, %v311
    %v316 = vadd.f32 %v307, %v311
    %v321 = vcombine.low %v313, %v314
    %v323 = vunpack.c.l.s4 1983009808
    %v324 = vunpack.c.0.s8 %v323
    %v325 = vlaneseq
    %v326 = vshrl.u32 %v325, 7
    %v327 = vsub.s32 %v324, %v326
    %v328 = vrot.slane %v321, %v327
    %v329 = vcombine.low %v315, %v316
    %v331 = vunpack.c.l.s4 1983009808
    %v332 = vunpack.c.0.s8 %v331
    %v333 = vlaneseq
    %v334 = vshrl.u32 %v333, 7
    %v335 = vsub.s32 %v332, %v334
    %v336 = vrot.slane %v329, %v335
    %339 = vst [vmem:[#allocation7] sm:$0xf] %v328
    %340 = vst [vmem:[#allocation7 + $0x8] sm:$0xf] %v336
    %341 = vset.pattern.permute.xlu0 1
    %342 = vperm.xlu0 %341, %v271
    %v343 = vpop.permute.xlu0 %342
    %v345 = vmul.f32 %v343, %v48
    %v346 = vmul.f32 %v343, %v49
    %v347 = vmul.f32 %v343, %v56
    %v348 = vmul.f32 %v343, %v57
    %349 = vset.pattern.permute.xlu0 1
    %350 = vperm.xlu0 %349, %v277
    %v351 = vpop.permute.xlu0 %350
    %v353 = vmul.f32 %v351, %v84
    %v354 = vmul.f32 %v351, %v85
    %v355 = vmul.f32 %v351, %v92
    %v356 = vmul.f32 %v351, %v93
    %v357 = vadd.f32 %v345, %v353
    %v358 = vadd.f32 %v346, %v354
    %v359 = vadd.f32 %v347, %v355
    %v360 = vadd.f32 %v348, %v356
    %361 = vset.pattern.permute.xlu0 4
    %362 = vperm.xlu0 %361, %v285
    %v363 = vpop.permute.xlu0 %362
    %v365 = vadd.f32 %v357, %v363
    %v366 = vadd.f32 %v358, %v363
    %v367 = vadd.f32 %v359, %v363
    %v368 = vadd.f32 %v360, %v363
    %v373 = vcombine.low %v365, %v366
    %v375 = vunpack.c.l.s4 1983009808
    %v376 = vunpack.c.0.s8 %v375
    %v377 = vlaneseq
    %v378 = vshrl.u32 %v377, 7
    %v379 = vsub.s32 %v376, %v378
    %v380 = vrot.slane %v373, %v379
    %v381 = vcombine.low %v367, %v368
    %v383 = vunpack.c.l.s4 1983009808
    %v384 = vunpack.c.0.s8 %v383
    %v385 = vlaneseq
    %v386 = vshrl.u32 %v385, 7
    %v387 = vsub.s32 %v384, %v386
    %v388 = vrot.slane %v381, %v387
    %s391 = scalar_lea.vmem [#allocation7], 4
    %392 = vst [vmem:[%s391] sm:$0xf] %v380
    %393 = vst [vmem:[%s391 + $0x8] sm:$0xf] %v388
    // Predicated region
    $region18: #{tpu_custom_call.1} parent=1 // pred_check
      _
    $region19: #{tpu_custom_call.1} parent=1 // pred_check_branch
      %395 = sbr.rel (0) target = $region21
    $region20: #{tpu_custom_call.1} parent=1 // pred_region
      %s397 = ssub.s32 256, 256
      %398 = vsyncadd [#allocation4], %s397
      %s399 = sshll.u32 [#allocation7], 4
      %s400 = int_to_ptr.vmem [resolvable:$true] %s399
      %405 = dma.vmem_to_hbm [thread:$0]  %s400, 256, %s2, [#allocation4], 64, 64, 4
    $region21: #{tpu_custom_call.1} parent=1 // pred_fallthru
      _
    // Predicated region
    $region22: #{tpu_custom_call.1} parent=1 // pred_check
      _
    $region23: #{tpu_custom_call.1} parent=1 // pred_check_branch
      %407 = sbr.rel (0) target = $region25
    $region24: #{tpu_custom_call.1} parent=1 // pred_region
      %408 = dma.done [#allocation4], 256
    $region25: #{tpu_custom_call.1} parent=1 // pred_fallthru
      _
    %409 = vsyncpa [#allocation3], 1
    %410 = vsyncpa [#allocation6], 1
    %411 = vsyncpa [#allocation4], 1

</llo_original>
